<compile_context>
chip_gen: v5e
topology: v5e:2x2
jax: 0.10.0
libtpu: 0.0.40
codegen_flags: <defaults>
</compile_context>

<pallas_src>
import functools

import jax
import jax.numpy as jnp
from jax.experimental import pallas as pl
from jax.experimental.pallas import tpu as pltpu

LANE = 128


def _round_up(a, m):
    return (a + m - 1) // m * m


# ---------------------------------------------------------------------------
# Fused kernel (per row tile):
#   y      = x @ [Wp | W1 | 0] + [bp | b1 | 0]          (single MXU pass, 128-lane wide)
#   logit  = sum(tanh(y) * [0 | w2 | 0], axis=-1)       (EUP + VPU + XLU lane reduce)
#   out    = lanes [0:H) -> relu(y)  (projection), lanes >= H -> logit
#            single unmasked 128-lane store
# ---------------------------------------------------------------------------
def _fused_kernel(x_ref, wcat_ref, bcat_ref, w2p_ref, out_ref, *, H, OUT_W):
    y = jnp.dot(x_ref[...], wcat_ref[...],
                preferred_element_type=jnp.float32) + bcat_ref[...]

    # Raw score logit. b2 and sigmoid dropped: monotone, so top_k indices are unchanged
    # and the score values are never returned by the module. Extra tanh lanes are killed
    # by the zero-padded w2 row.
    logit = jnp.sum(jnp.tanh(y) * w2p_ref[...], axis=-1, keepdims=True)   # (TILE_N, 1)

    lane = jax.lax.broadcasted_iota(jnp.int32, y.shape, 1)
    merged = jnp.where(lane < H, jnp.maximum(y, 0.0), logit)
    out_ref[...] = merged[:, :OUT_W]


def fused_forward(x, params):
    """One pallas_call. Returns (p_full [N, H], score_logits [N])."""
    N, D = x.shape
    H = params["w1"].shape[1]
    WCAT_W = _round_up(2 * H, LANE)   # width of the fused matmul output
    OUT_W = _round_up(H + 1, LANE)    # width of the merged lane-dense output

    f32 = jnp.float32
    # Concatenate + lane-pad the weights once (tiny, constant-foldable for fixed params).
    wcat = (jnp.zeros((D, WCAT_W), f32)
            .at[:, :H].set(params["wp"].astype(f32))
            .at[:, H:2 * H].set(params["w1"].astype(f32)))
    bcat = (jnp.zeros((1, WCAT_W), f32)
            .at[:, :H].set(params["bp"].astype(f32))
            .at[:, H:2 * H].set(params["b1"].astype(f32)))
    w2p = (jnp.zeros((1, WCAT_W), f32)
           .at[:, H:2 * H].set(params["w2"].reshape(1, H).astype(f32)))

    # Row tiling: whole array as one block for small/medium N (block dims equal to full
    # array dims are always legal), 1024-row tiles otherwise. No host-side pad copy —
    # Pallas masks the ragged last block; ragged rows never hit HBM (out has N rows).
    TILE_N = N if N <= 1024 else 1024
    grid = (pl.cdiv(N, TILE_N),)

    kernel = functools.partial(_fused_kernel, H=H, OUT_W=OUT_W)

    out = pl.pallas_call(
        kernel,
        out_shape=jax.ShapeDtypeStruct((N, OUT_W), f32),
        grid=grid,
        in_specs=[
            pl.BlockSpec((TILE_N, D), lambda i: (i, 0)),    # x        (row-tiled)
            pl.BlockSpec((D, WCAT_W), lambda i: (0, 0)),    # [Wp|W1]  (resident)
            pl.BlockSpec((1, WCAT_W), lambda i: (0, 0)),    # [bp|b1]
            pl.BlockSpec((1, WCAT_W), lambda i: (0, 0)),    # w2 row (lane-padded)
        ],
        out_specs=pl.BlockSpec((TILE_N, OUT_W), lambda i: (i, 0)),
        compiler_params=pltpu.CompilerParams(
            dimension_semantics=("parallel",),
        ),
    )(x.astype(f32), wcat, bcat, w2p)

    return out[:, :H], out[:, H]


# ---------------------------------------------------------------------------
# Full forward (glue in plain JAX: top-k + gathers + tiny mean — no FLOPs there)
# ---------------------------------------------------------------------------
def hierarchical_pooling(x, adj, params, pooling_ratio=0.5):
    N = x.shape[0]
    p_full, logits = fused_forward(x, params)            # [N, H], [N]

    k = max(1, min(int(N * pooling_ratio), N))            # static k (Python-level)
    _, idx = jax.lax.top_k(logits, k)                     # same indices as sigmoid(logits)+b2

    x_projected = jnp.take(p_full, idx, axis=0)                      # [k, H]
    adj_pooled = jnp.take(jnp.take(adj, idx, axis=0), idx, axis=1)   # [k, k]
    graph_rep = jnp.mean(x_projected, axis=0)                        # [H]
    return x_projected, adj_pooled, graph_rep


# Pure-JAX reference (mirrors the PyTorch module, eval mode) for correctness checks.
def hierarchical_pooling_ref(x, adj, params, pooling_ratio=0.5):
    h = jnp.tanh(x @ params["w1"] + params["b1"])
    s = jax.nn.sigmoid(h @ params["w2"] + params["b2"]).reshape(-1)
    N = x.shape[0]
    k = max(1, min(int(N * pooling_ratio), N))
    _, idx = jax.lax.top_k(s, k)
    xp = x[idx]
    adjp = adj[idx][:, idx]
    p = jnp.maximum(xp @ params["wp"] + params["bp"], 0.0)
    return p, adjp, p.mean(axis=0)


if __name__ == "__main__":
    input_dim, hidden_dim = 32, 32
    pooling_ratio = 0.5

    key = jax.random.PRNGKey(0)
    kx, ka, k1, k2, k3, k4, k5, k6, kx2 = jax.random.split(key, 9)

    params = {
        # score_layer: Linear(input_dim, hidden_dim) -> Tanh -> Linear(hidden_dim, 1)
        "w1": jax.random.normal(k1, (input_dim, hidden_dim), jnp.float32) * 0.1,
        "b1": jax.random.normal(k2, (1, hidden_dim), jnp.float32) * 0.1,
        "w2": jax.random.normal(k3, (hidden_dim, 1), jnp.float32) * 0.1,
        "b2": jax.random.normal(k4, (1, 1), jnp.float32) * 0.1,
        # projection: Linear(input_dim, hidden_dim)
        "wp": jax.random.normal(k5, (input_dim, hidden_dim), jnp.float32) * 0.1,
        "bp": jax.random.normal(k6, (1, hidden_dim), jnp.float32) * 0.1,
    }

    # ----- small end-to-end check (single tile) -----
    N = 16
    x = jax.random.normal(kx, (N, input_dim), dtype=jnp.float32)
    adj = (jax.random.uniform(ka, (N, N)) > 0.5).astype(jnp.float32)

    x_proj, adj_pooled, graph_rep = hierarchical_pooling(x, adj, params, pooling_ratio)
    jax.block_until_ready((x_proj, adj_pooled, graph_rep))

    xr, ar, gr = hierarchical_pooling_ref(x, adj, params, pooling_ratio)
    assert x_proj.shape == (N // 2, hidden_dim)
    assert adj_pooled.shape == (N // 2, N // 2)
    assert graph_rep.shape == (hidden_dim,)
    assert jnp.allclose(x_proj, xr, rtol=1e-5, atol=1e-5)
    assert jnp.allclose(adj_pooled, ar)
    assert jnp.allclose(graph_rep, gr, rtol=1e-5, atol=1e-5)

    # ----- multi-tile + ragged-last-block check (no host pad copy; grid = cdiv) -----
    # Compare the fused kernel outputs element-wise (avoids top-k tie fragility).
    N2 = 1300
    x2 = jax.random.normal(kx2, (N2, input_dim), dtype=jnp.float32)
    p2, logit2 = fused_forward(x2, params)
    jax.block_until_ready((p2, logit2))
    p2_ref = jnp.maximum(x2 @ params["wp"] + params["bp"], 0.0)
    logit2_ref = (jnp.tanh(x2 @ params["w1"] + params["b1"]) @ params["w2"]).reshape(-1)
    assert p2.shape == (N2, hidden_dim)
    assert jnp.allclose(p2, p2_ref, rtol=1e-5, atol=2e-5)
    assert jnp.allclose(logit2, logit2_ref, rtol=1e-4, atol=1e-4)

    print("KERNEL_OK")
</pallas_src>

<mosaic_0001>
module attributes {stable_mosaic.version = 11 : i64} {
  func.func @_fused_kernel(%arg0: i32, %arg1: memref<16x32xf32, #tpu.memory_space<vmem>>, %arg2: memref<32x128xf32, #tpu.memory_space<vmem>>, %arg3: memref<1x128xf32, #tpu.memory_space<vmem>>, %arg4: memref<1x128xf32, #tpu.memory_space<vmem>>, %arg5: memref<16x128xf32, #tpu.memory_space<vmem>>) attributes {dimension_semantics = [#tpu.dimension_semantics<parallel>], iteration_bounds = array<i64: 1>, scalar_prefetch = 0 : i64, scratch_operands = 0 : i64, tpu.core_type = #tpu.core_type<tc>, window_params = [{transform_indices = @transform_0, window_bounds = array<i64: 16, 32>}, {pipeline_mode = #tpu.pipeline_mode<synchronous>, transform_indices = @transform_1, window_bounds = array<i64: 32, 128>}, {pipeline_mode = #tpu.pipeline_mode<synchronous>, transform_indices = @transform_2, window_bounds = array<i64: 1, 128>}, {pipeline_mode = #tpu.pipeline_mode<synchronous>, transform_indices = @transform_3, window_bounds = array<i64: 1, 128>}, {transform_indices = @transform_4, window_bounds = array<i64: 16, 128>}]} {
    %c0 = arith.constant 0 : index
    %c0_0 = arith.constant 0 : index
    %0 = vector.load %arg1[%c0, %c0_0] : memref<16x32xf32, #tpu.memory_space<vmem>>, vector<16x32xf32>
    %c0_1 = arith.constant 0 : index
    %c0_2 = arith.constant 0 : index
    %1 = vector.load %arg2[%c0_1, %c0_2] : memref<32x128xf32, #tpu.memory_space<vmem>>, vector<32x128xf32>
    %cst = arith.constant dense<0.000000e+00> : vector<16x128xf32>
    %2 = tpu.matmul %0, %1, %cst {dimension_numbers = #tpu.dot_dimension_numbers<[1], [0], [0], [1], [0, 0, 1, 1], [], []>} : vector<16x32xf32>, vector<32x128xf32>, vector<16x128xf32> -> vector<16x128xf32>
    %c0_3 = arith.constant 0 : index
    %c0_4 = arith.constant 0 : index
    %3 = vector.load %arg3[%c0_3, %c0_4] : memref<1x128xf32, #tpu.memory_space<vmem>>, vector<1x128xf32>
    %4 = vector.broadcast %3 : vector<1x128xf32> to vector<16x128xf32>
    %5 = arith.addf %2, %4 : vector<16x128xf32>
    %6 = math.tanh %5 : vector<16x128xf32>
    %c0_5 = arith.constant 0 : index
    %c0_6 = arith.constant 0 : index
    %7 = vector.load %arg4[%c0_5, %c0_6] : memref<1x128xf32, #tpu.memory_space<vmem>>, vector<1x128xf32>
    %8 = vector.broadcast %7 : vector<1x128xf32> to vector<16x128xf32>
    %9 = arith.mulf %6, %8 : vector<16x128xf32>
    %cst_7 = arith.constant dense<0.000000e+00> : vector<16xf32>
    %10 = vector.multi_reduction <add>, %9, %cst_7 [1] : vector<16x128xf32> to vector<16xf32>
    %11 = vector.shape_cast %10 : vector<16xf32> to vector<16x1xf32>
    %12 = tpu.iota {dimensions = array<i32: 1>} : vector<16x128xi32>
    %c32_i32 = arith.constant 32 : i32
    %13 = vector.broadcast %c32_i32 : i32 to vector<16x128xi32>
    %14 = arith.cmpi slt, %12, %13 : vector<16x128xi32>
    %cst_8 = arith.constant 0.000000e+00 : f32
    %15 = vector.broadcast %cst_8 : f32 to vector<16x128xf32>
    %16 = arith.maximumf %5, %15 : vector<16x128xf32>
    %17 = vector.shape_cast %11 : vector<16x1xf32> to vector<16x1xf32>
    %18 = vector.broadcast %17 : vector<16x1xf32> to vector<16x128xf32>
    %19 = arith.select %14, %16, %18 : vector<16x128xi1>, vector<16x128xf32>
    %c0_9 = arith.constant 0 : index
    %c0_10 = arith.constant 0 : index
    %20 = vector.load %arg5[%c0_9, %c0_10] : memref<16x128xf32, #tpu.memory_space<vmem>>, vector<16x128xf32>
    tpu.vector_store %arg5[%c0_9, %c0_10], %19 {strides = array<i32>} : memref<16x128xf32, #tpu.memory_space<vmem>>, vector<16x128xf32>,
    return
  }
  func.func @transform_0(%arg0: i32) -> (i32, i32) {
    %c0_i32 = arith.constant 0 : i32
    %c0_i32_0 = arith.constant 0 : i32
    return %arg0, %c0_i32 : i32, i32
  }
  func.func @transform_1(%arg0: i32) -> (i32, i32) {
    %c0_i32 = arith.constant 0 : i32
    %c0_i32_0 = arith.constant 0 : i32
    %c0_i32_1 = arith.constant 0 : i32
    return %c0_i32, %c0_i32_0 : i32, i32
  }
  func.func @transform_2(%arg0: i32) -> (i32, i32) {
    %c0_i32 = arith.constant 0 : i32
    %c0_i32_0 = arith.constant 0 : i32
    %c0_i32_1 = arith.constant 0 : i32
    return %c0_i32, %c0_i32_0 : i32, i32
  }
  func.func @transform_3(%arg0: i32) -> (i32, i32) {
    %c0_i32 = arith.constant 0 : i32
    %c0_i32_0 = arith.constant 0 : i32
    %c0_i32_1 = arith.constant 0 : i32
    return %c0_i32, %c0_i32_0 : i32, i32
  }
  func.func @transform_4(%arg0: i32) -> (i32, i32) {
    %c0_i32 = arith.constant 0 : i32
    %c0_i32_0 = arith.constant 0 : i32
    return %arg0, %c0_i32 : i32, i32
  }
}

</mosaic_0001>

<llo_original>
// kernel: tpu_custom_call.1
$region0: #{tpu_custom_call.1}
  #allocation0 [shape = 'u32[]', space=smem, size = 0x4, offset = 0x4, fixed_abs, tag = 'smem constant byte address 0x4 - core index']
  #allocation1 [shape = 'u32[72,128]{1,0:T(1,128)}', space=vmem, size = 0x9000, scoped, tag = 'internal scratch']
  %s0 = inlined_call_operand.hbm [shape: f32[16,32], index: 0, kind: input, shape index: {}]
  %s1 = inlined_call_operand.hbm [shape: f32[32,128], index: 1, kind: input, shape index: {}]
  %s2 = inlined_call_operand.vmem [shape: f32[1,128], index: 2, kind: input, shape index: {}]
  %s3 = inlined_call_operand.vmem [shape: f32[1,128], index: 3, kind: input, shape index: {}]
  %s4 = inlined_call_operand.hbm [shape: f32[16,128], index: 4, kind: output, shape index: {}]
  %s5 = sld [smem:[#allocation0]]
  $region34: #{tpu_custom_call.1} parent=0
    _
  %s7 = ssub.s32 1, %s5
  %s8 = scalar_select 0, %s7, %s5
  $region1: #{tpu_custom_call.1} parent=0
    #allocation2 [shape = 'u8[8192]{0}', space=vmem, size = 0x2000, scoped, tag = 'input window, operand 0, single buffered']
    #allocation3 [shape = 's32[1]{0}', space=sflag, size = 0x4, scoped, tag = 'scoped memory for tpu_custom_call.1']
    #allocation4 [shape = 's32[1]{0}', space=sflag, size = 0x4, scoped, tag = 'scoped memory for tpu_custom_call.1']
    #allocation5 [shape = 'u8[16384]{0}', space=vmem, size = 0x4000, scoped, tag = 'input window, operand 1, single buffered']
    #allocation6 [shape = 's32[1]{0}', space=sflag, size = 0x4, scoped, tag = 'scoped memory for tpu_custom_call.1']
    #allocation7 [shape = 'u8[8192]{0}', space=vmem, size = 0x2000, scoped, tag = 'output window, operand 0, single buffered']
    %9 = vsyncpa [#allocation3], 0
    %10 = vsyncpa [#allocation6], 0
    %11 = vsyncpa [#allocation4], 0
    // Predicated region
    $region2: #{tpu_custom_call.1} parent=1 // pred_check
      _
    $region3: #{tpu_custom_call.1} parent=1 // pred_check_branch
      %13 = sbr.rel (0) target = $region5
    $region4: #{tpu_custom_call.1} parent=1 // pred_region
      %15 = vsyncadd [#allocation3], 0
      %s16 = sshll.u32 %s0, 4
      %s17 = int_to_ptr.hbm [resolvable:$true] %s16
      %s18 = sshll.u32 [#allocation2], 4
      %s19 = int_to_ptr.vmem [resolvable:$true] %s18
      %24 = dma.hbm_to_vmem [thread:$0]  %s17, 256, %s19, [#allocation3], 128, 128, 8
    $region5: #{tpu_custom_call.1} parent=1 // pred_fallthru
      _
    // Predicated region
    $region6: #{tpu_custom_call.1} parent=1 // pred_check
      _
    $region7: #{tpu_custom_call.1} parent=1 // pred_check_branch
      %26 = sbr.rel (0) target = $region9
    $region8: #{tpu_custom_call.1} parent=1 // pred_region
      %28 = vsyncadd [#allocation6], 0
      %s29 = sshll.u32 %s1, 4
      %s30 = int_to_ptr.hbm [resolvable:$true] %s29
      %s31 = sshll.u32 [#allocation5], 4
      %s32 = int_to_ptr.vmem [resolvable:$true] %s31
      %37 = dma.hbm_to_vmem [thread:$0]  %s30, 512, %s32, [#allocation6], 128, 128, 8
    $region9: #{tpu_custom_call.1} parent=1 // pred_fallthru
      _
    // Predicated region
    $region10: #{tpu_custom_call.1} parent=1 // pred_check
      _
    $region11: #{tpu_custom_call.1} parent=1 // pred_check_branch
      %39 = sbr.rel (0) target = $region13
    $region12: #{tpu_custom_call.1} parent=1 // pred_region
      _
    $region13: #{tpu_custom_call.1} parent=1 // pred_fallthru
      _
    // Predicated region
    $region14: #{tpu_custom_call.1} parent=1 // pred_check
      _
    $region15: #{tpu_custom_call.1} parent=1 // pred_check_branch
      %41 = sbr.rel (0) target = $region17
    $region16: #{tpu_custom_call.1} parent=1 // pred_region
      _
    $region17: #{tpu_custom_call.1} parent=1 // pred_fallthru
      _
    // Predicated region
    $region18: #{tpu_custom_call.1} parent=1 // pred_check
      _
    $region19: #{tpu_custom_call.1} parent=1 // pred_check_branch
      %43 = sbr.rel (0) target = $region21
    $region20: #{tpu_custom_call.1} parent=1 // pred_region
      %45 = dma.done [#allocation3], 256
    $region21: #{tpu_custom_call.1} parent=1 // pred_fallthru
      _
    // Predicated region
    $region22: #{tpu_custom_call.1} parent=1 // pred_check
      _
    $region23: #{tpu_custom_call.1} parent=1 // pred_check_branch
      %47 = sbr.rel (0) target = $region25
    $region24: #{tpu_custom_call.1} parent=1 // pred_region
      %49 = dma.done [#allocation6], 512
    $region25: #{tpu_custom_call.1} parent=1 // pred_fallthru
      _
    %v50 = vld [vmem:[#allocation2] sm:$0xff]
    %v51 = vld [vmem:[#allocation2 + $0x8] sm:$0xff]
    %v52 = vld [vmem:[#allocation5] sm:$0xff]
    %v53 = vld [vmem:[#allocation5 + $0x8] sm:$0xff]
    %v54 = vld [vmem:[#allocation5 + $0x10] sm:$0xff]
    %v55 = vld [vmem:[#allocation5 + $0x18] sm:$0xff]
    %v56 = vld [vmem:[%s2] sm:$0x1]
    %v58 = vperm.slane %v56, 0
    %vm60 = vcmask 261120
    %v62 = vsel %vm60, %v50, 0
    %v65 = vsel %vm60, %v51, 0
    %67 = vmatpush.msra.mxu0 0.0
    %68 = vmatpush.msra.mxu0 0.0
    %69 = vmatpush.msra.mxu0 0.0
    %70 = vmatpush.msra.mxu0 0.0
    %71 = vmatpush.msra.mxu0 0.0
    %72 = vmatpush.msra.mxu0 0.0
    %73 = vmatpush.msra.mxu0 0.0
    %74 = vmatpush.msra.mxu0 0.0
    %75 = vmatpush.msra.mxu0 0.0
    %76 = vmatpush.msra.mxu0 0.0
    %77 = vmatpush.msra.mxu0 0.0
    %78 = vmatpush.msra.mxu0 0.0
    %79 = vmatpush.msra.mxu0 %v55
    %80 = vmatpush.msra.mxu0 %v54
    %81 = vmatpush.msra.mxu0 %v53
    %82 = vmatpush.msra.mxu0 %v52
    %83 = vmatmul.f32.gmra.mxu0 %v62
    %v84 = vpop.f32.mrf.mxu0
    %v85 = vadd.f32 %v58, %v84
    %86 = vmatmul.f32.gmra.mxu0 %v65
    %v87 = vpop.f32.mrf.mxu0
    %v88 = vadd.f32 %v58, %v87
    %89 = vdwg.mxu0
    %v90 = vtanh.pop %v85
    %v91 = vtanh.pop %v88
    %v92 = vld [vmem:[%s3] sm:$0x1]
    %v94 = vperm.slane %v92, 0
    %v96 = vmul.f32 %v90, %v94
    %v97 = vmul.f32 %v91, %v94
    %98 = vadd.xlane.f32.xlu0 %v96
    %v99 = vpop.xlane.xlu0 %98
    %100 = vadd.xlane.f32.xlu0 %v97
    %v101 = vpop.xlane.xlu0 %100
    %v102 = vlaneseq
    %v103 = vand.u32 %v102, 127
    %vm104 = vcmp.lt.s32.totalorder %v103, 32
    %v105 = vmax.f32 %v85, 0.0
    %v106 = vmax.f32 %v88, 0.0
    %v107 = vsel %vm104, %v105, %v99
    %v108 = vsel %vm104, %v106, %v101
    %109 = vst [vmem:[#allocation7] sm:$0xff] %v107
    %110 = vst [vmem:[#allocation7 + $0x8] sm:$0xff] %v108
    // Predicated region
    $region26: #{tpu_custom_call.1} parent=1 // pred_check
      _
    $region27: #{tpu_custom_call.1} parent=1 // pred_check_branch
      %112 = sbr.rel (0) target = $region29
    $region28: #{tpu_custom_call.1} parent=1 // pred_region
      %114 = vsyncadd [#allocation4], 0
      %s115 = sshll.u32 [#allocation7], 4
      %s116 = int_to_ptr.vmem [resolvable:$true] %s115
      %s117 = sshll.u32 %s4, 4
      %s118 = int_to_ptr.hbm [resolvable:$true] %s117
      %123 = dma.vmem_to_hbm [thread:$0]  %s116, 256, %s118, [#allocation4], 128, 128, 8
    $region29: #{tpu_custom_call.1} parent=1 // pred_fallthru
      _
    // Predicated region
    $region30: #{tpu_custom_call.1} parent=1 // pred_check
      _
    $region31: #{tpu_custom_call.1} parent=1 // pred_check_branch
      %125 = sbr.rel (0) target = $region33
    $region32: #{tpu_custom_call.1} parent=1 // pred_region
      %127 = dma.done [#allocation4], 256
    $region33: #{tpu_custom_call.1} parent=1 // pred_fallthru
      _
    %128 = vsyncpa [#allocation3], 1
    %129 = vsyncpa [#allocation6], 1
    %130 = vsyncpa [#allocation4], 1

</llo_original>
